<compile_context>
chip_gen: v7x
topology: tpu7x:2x2x1
jax: 0.10.0
libtpu: 0.0.40
codegen_flags: <defaults>
</compile_context>

<pallas_src>
import functools

import jax
import jax.numpy as jnp
from jax import lax
from jax.experimental import pallas as pl
from jax.experimental.pallas import tpu as pltpu


# ---------------------------------------------------------------------------
# Helpers.
# ---------------------------------------------------------------------------
def _round_up(x, m):
    return ((x + m - 1) // m) * m


def _pick_tile(dim, cap):
    """Largest tile <= cap that evenly divides dim, preferring 128/8 multiples."""
    if dim <= cap:
        return dim
    for step in (128, 8, 1):
        t = cap - (cap % step)
        while t >= step:
            if dim % t == 0:
                return t
            t -= step
    return dim


def _vmem_budget_bytes(default=32 * 1024 * 1024):
    """Per-generation scoped-VMEM budget (v5e/v6e: big, v7x: 64MiB/TC -> ~48MiB)."""
    try:
        info = pltpu.get_tpu_info()
        cap = getattr(info, "vmem_capacity_bytes", None)
        if cap:
            return int(min(int(cap) * 3 // 4, 96 * 1024 * 1024))
    except Exception:
        pass
    return default


# ---------------------------------------------------------------------------
# Stage A / C: batched  (M, K) @ (K, N) + bias  (all the time-parallel work).
# ---------------------------------------------------------------------------
def _matmul_bias_kernel(x_ref, w_ref, b_ref, o_ref):
    acc = jnp.dot(x_ref[...], w_ref[...], preferred_element_type=jnp.float32)
    o_ref[...] = (acc + b_ref[...]).astype(o_ref.dtype)


def matmul_bias_pallas(x, w, b, *, out_dtype=jnp.float32, weight_outer=False,
                       vmem_budget=32 * 1024 * 1024, tm_cap=512, tn_cap=1024):
    """x: (M, K), w: (K, N) (pre-transposed), b: (1, N) f32 -> (M, N).

    weight_outer=True puts the N (weight) block index on the OUTER grid axis so the
    weight block is held while row blocks stream (best when tn > tm, e.g. vocab proj)."""
    M, K = x.shape
    K2, N = w.shape
    assert K == K2, (K, K2)
    in_item = jnp.dtype(x.dtype).itemsize
    out_item = jnp.dtype(out_dtype).itemsize

    tm = _pick_tile(M, tm_cap)
    tn = _pick_tile(N, tn_cap)

    def vmem_need(tm_, tn_):
        # double-buffered input/output blocks + f32 accumulator headroom
        return 2 * ((tm_ * K + K * tn_ + tn_) * in_item + tm_ * tn_ * out_item) \
            + tm_ * tn_ * 4

    # Shrink tiles until the double-buffered working set fits the scoped-VMEM budget.
    while vmem_need(tm, tn) > int(vmem_budget * 0.7):
        if tn >= tm and tn > 128:
            new_tn = _pick_tile(N, max(tn // 2, 128))
            if new_tn < tn:
                tn = new_tn
                continue
        if tm > 8:
            new_tm = _pick_tile(M, max(tm // 2, 8))
            if new_tm < tm:
                tm = new_tm
                continue
        break

    if weight_outer:
        grid = (N // tn, M // tm)
        x_spec = pl.BlockSpec((tm, K), lambda j, i: (i, 0))
        w_spec = pl.BlockSpec((K, tn), lambda j, i: (0, j))
        b_spec = pl.BlockSpec((1, tn), lambda j, i: (0, j))
        o_spec = pl.BlockSpec((tm, tn), lambda j, i: (i, j))
    else:
        grid = (M // tm, N // tn)
        x_spec = pl.BlockSpec((tm, K), lambda i, j: (i, 0))
        w_spec = pl.BlockSpec((K, tn), lambda i, j: (0, j))
        b_spec = pl.BlockSpec((1, tn), lambda i, j: (0, j))
        o_spec = pl.BlockSpec((tm, tn), lambda i, j: (i, j))

    cost = pl.CostEstimate(
        flops=2 * M * K * N,
        transcendentals=0,
        bytes_accessed=(x.size * x.dtype.itemsize + w.size * w.dtype.itemsize
                        + b.size * b.dtype.itemsize + M * N * out_item),
    )
    return pl.pallas_call(
        _matmul_bias_kernel,
        out_shape=jax.ShapeDtypeStruct((M, N), out_dtype),
        grid_spec=pltpu.PrefetchScalarGridSpec(
            num_scalar_prefetch=0,
            grid=grid,
            in_specs=[x_spec, w_spec, b_spec],
            out_specs=o_spec,
        ),
        compiler_params=pltpu.CompilerParams(
            # Both axes independent -> megacore sharding across TensorCores.
            dimension_semantics=("parallel", "parallel"),
            vmem_limit_bytes=int(vmem_budget),
        ),
        cost_estimate=cost,
    )(x, w, b)


# ---------------------------------------------------------------------------
# Stage B: the true sequential part.  Grid = (batch blocks [parallel], time
# chunks [arbitrary]); the time loop runs inside the kernel, h/c live in VMEM
# scratch carried across time chunks (per batch block, per core).
# ---------------------------------------------------------------------------
def _lstm_recurrence_kernel(gx_ref, whh_ref, h_all_ref, h_sc, c_sc, *,
                            hp, t_chunk, unroll):
    """gx_ref   : (t_chunk, bt, 4Hp)  precomputed x_t @ W_ih^T + b (time-major)
       whh_ref  : (Hp, 4Hp)           pre-transposed, gate-padded hidden->hidden weights
       h_all_ref: (t_chunk, bt, Hp)   hidden states for this chunk (time-major)
       h_sc,c_sc: (bt, Hp) f32        recurrent state carried across time chunks.
       Correctness: the time axis (grid axis 1) must stay 'arbitrary'/sequential."""
    @pl.when(pl.program_id(1) == 0)
    def _():
        h_sc[...] = jnp.zeros_like(h_sc)
        c_sc[...] = jnp.zeros_like(c_sc)

    whh = whh_ref[...]                      # loop-invariant weight load (hoisted)

    def step(t, carry):
        # gx may be bf16 (halved HBM/VMEM traffic); gate math stays f32.
        gates = gx_ref[t].astype(jnp.float32) + jnp.dot(
            h_sc[...].astype(whh.dtype), whh, preferred_element_type=jnp.float32)
        # PyTorch gate order: i, f, g, o.  Hp is a multiple of 128 so every gate
        # slice is a lane-aligned slab (no XLU relayout on the serial path).
        i_g = jax.nn.sigmoid(gates[:, 0 * hp:1 * hp])
        f_g = jax.nn.sigmoid(gates[:, 1 * hp:2 * hp])
        g_g = jnp.tanh(gates[:, 2 * hp:3 * hp])
        o_g = jax.nn.sigmoid(gates[:, 3 * hp:4 * hp])

        c_new = f_g * c_sc[...] + i_g * g_g
        h_new = o_g * jnp.tanh(c_new)
        c_sc[...] = c_new
        h_sc[...] = h_new
        h_all_ref[t] = h_new.astype(h_all_ref.dtype)     # dense (bt, Hp) store
        return carry

    lax.fori_loop(0, t_chunk, step, 0, unroll=unroll)


def lstm_recurrence_pallas(gx, w_hh_p, *, out_dtype, vmem_budget):
    """gx: (Tp, Bp, 4Hp) time-major, w_hh_p: (Hp, 4Hp) -> hidden states (Tp, Bp, Hp)."""
    Tp, Bp, H4p = gx.shape
    Hp = w_hh_p.shape[0]
    assert H4p == 4 * Hp

    # Split the batch across the two TensorCores (v7x) when there is enough of it.
    bt = Bp // 2 if (Bp >= 16 and Bp % 16 == 0) else Bp

    gx_item = jnp.dtype(gx.dtype).itemsize
    out_item = jnp.dtype(out_dtype).itemsize
    w_bytes = 2 * Hp * H4p * jnp.dtype(w_hh_p.dtype).itemsize
    scratch_bytes = 2 * bt * Hp * 4

    t_chunk = _pick_tile(Tp, 64)

    def vmem_need(tc):
        return (w_bytes + scratch_bytes
                + 2 * tc * bt * (H4p * gx_item + Hp * out_item)
                + bt * H4p * 4)            # f32 gates temp

    while vmem_need(t_chunk) > int(vmem_budget * 0.7) and t_chunk > 8:
        new_tc = _pick_tile(Tp, max(t_chunk // 2, 8))
        if new_tc >= t_chunk:
            break
        t_chunk = new_tc

    unroll = True if t_chunk <= 8 else 8
    kernel = functools.partial(_lstm_recurrence_kernel,
                               hp=Hp, t_chunk=t_chunk, unroll=unroll)

    cost = pl.CostEstimate(
        flops=2 * Tp * Bp * Hp * H4p + 10 * Tp * Bp * Hp,
        transcendentals=5 * Tp * Bp * Hp,
        bytes_accessed=(gx.size * gx_item
                        + w_hh_p.size * jnp.dtype(w_hh_p.dtype).itemsize
                        + Tp * Bp * Hp * out_item),
    )
    return pl.pallas_call(
        kernel,
        out_shape=jax.ShapeDtypeStruct((Tp, Bp, Hp), out_dtype),
        grid_spec=pltpu.PrefetchScalarGridSpec(
            num_scalar_prefetch=0,
            grid=(Bp // bt, Tp // t_chunk),
            in_specs=[
                pl.BlockSpec((t_chunk, bt, H4p), lambda b, t: (t, b, 0)),
                pl.BlockSpec((Hp, H4p), lambda b, t: (0, 0)),
            ],
            out_specs=pl.BlockSpec((t_chunk, bt, Hp), lambda b, t: (t, b, 0)),
            scratch_shapes=[
                pltpu.VMEM((bt, Hp), jnp.float32),   # h state
                pltpu.VMEM((bt, Hp), jnp.float32),   # c state
            ],
        ),
        compiler_params=pltpu.CompilerParams(
            # Batch blocks independent (per-core scratch); time must stay sequential.
            dimension_semantics=("parallel", "arbitrary"),
            vmem_limit_bytes=int(vmem_budget),
        ),
        cost_estimate=cost,
    )(gx, w_hh_p)


# ---------------------------------------------------------------------------
# Full RNNDecoder.forward
# ---------------------------------------------------------------------------
def rnn_decoder_forward(params, features, captions, *, matmul_dtype=jnp.float32):
    """features: (B, E) f32, captions: (B, Tc) int32 -> logits (B, Tc, V) f32.

    matmul_dtype=jnp.bfloat16 feeds the MXU its native input dtype and emits gx / h
    in bf16 (halved HBM traffic); f32 accumulation and f32 h/c/gate state are kept."""
    B, Tc = captions.shape
    E = params["embedding"].shape[1]
    H4 = params["w_ih"].shape[0]
    H = H4 // 4
    V = params["w_fc"].shape[0]
    T = Tc                                     # sequence length after concat

    # Padded sizes: lane-dense gates/hidden/vocab, sublane-dense batch/time.
    Hp = _round_up(H, 128)
    Vp = _round_up(V, 128)
    Bp = _round_up(max(B, 8), 8)
    Tp = _round_up(T, 8)

    budget = _vmem_budget_bytes()

    # --- glue: embedding lookup, built time-major directly (no (B,T,E) transpose) ---
    emb_tm = jnp.take(params["embedding"], captions[:, :-1].T, axis=0)    # (T-1, B, E)
    x_tm = jnp.concatenate([features[None, :, :], emb_tm], axis=0)        # (T, B, E)
    x_tm = jnp.pad(x_tm, ((0, Tp - T), (0, Bp - B), (0, 0)))              # zero pad
    x_flat = x_tm.reshape(Tp * Bp, E).astype(matmul_dtype)

    # --- gate-padded, pre-transposed weights: each gate slab is Hp lanes wide ---
    w_ih_t = params["w_ih"].T.astype(matmul_dtype)                        # (E, 4H)
    w_hh_t = params["w_hh"].T.astype(matmul_dtype)                        # (H, 4H)
    b_comb = (params["b_ih"] + params["b_hh"]).astype(jnp.float32)        # (4H,)

    w_ih_p = jnp.zeros((E, 4 * Hp), matmul_dtype)
    w_hh_p = jnp.zeros((Hp, 4 * Hp), matmul_dtype)
    b_p = jnp.zeros((1, 4 * Hp), jnp.float32)
    for k in range(4):
        w_ih_p = w_ih_p.at[:, k * Hp:k * Hp + H].set(w_ih_t[:, k * H:(k + 1) * H])
        w_hh_p = w_hh_p.at[:H, k * Hp:k * Hp + H].set(w_hh_t[:, k * H:(k + 1) * H])
        b_p = b_p.at[0, k * Hp:k * Hp + H].set(b_comb[k * H:(k + 1) * H])
    # Pad gates/bias are exactly zero => padded h/c columns stay exactly zero.

    w_fc_p = jnp.zeros((Hp, Vp), matmul_dtype).at[:H, :V].set(
        params["w_fc"].T.astype(matmul_dtype))                            # (Hp, Vp)
    b_fc_p = jnp.zeros((1, Vp), jnp.float32).at[0, :V].set(
        params["b_fc"].astype(jnp.float32))

    # Stage A: time-parallel input projection; bf16 output on the bf16 path.
    gx = matmul_bias_pallas(x_flat, w_ih_p, b_p, out_dtype=matmul_dtype,
                            weight_outer=False, vmem_budget=budget)
    gx = gx.reshape(Tp, Bp, 4 * Hp)

    # Stage B: only the true sequential work; batch split across cores on v7x.
    h_all = lstm_recurrence_pallas(gx, w_hh_p, out_dtype=matmul_dtype,
                                   vmem_budget=budget)                    # (Tp, Bp, Hp)

    # Re-lay-out the (small) hidden states batch-major so the (large) logits never
    # need a transpose.  # TODO(synk): fuse this into Stage B/C.
    h_bm = jnp.swapaxes(h_all, 0, 1).reshape(Bp * Tp, Hp)

    # Stage C: vocab projection; the big W_fc block is held on the outer grid axis.
    logits = matmul_bias_pallas(h_bm, w_fc_p, b_fc_p, out_dtype=jnp.float32,
                                weight_outer=True, vmem_budget=budget)    # (Bp*Tp, Vp)
    logits = logits.reshape(Bp, Tp, Vp)[:B, :T, :V]                       # (B, T, V)
    return logits


# ---------------------------------------------------------------------------
# Pure-JAX reference for correctness checking.
# ---------------------------------------------------------------------------
def _reference_forward(params, features, captions):
    embeds = jnp.take(params["embedding"], captions[:, :-1], axis=0)
    x = jnp.concatenate([features[:, None, :], embeds], axis=1)
    B, T, E = x.shape
    H = params["w_hh"].shape[1]
    b = params["b_ih"] + params["b_hh"]

    def step(carry, x_t):
        h, c = carry
        gates = x_t @ params["w_ih"].T + h @ params["w_hh"].T + b
        i = jax.nn.sigmoid(gates[:, 0 * H:1 * H])
        f = jax.nn.sigmoid(gates[:, 1 * H:2 * H])
        g = jnp.tanh(gates[:, 2 * H:3 * H])
        o = jax.nn.sigmoid(gates[:, 3 * H:4 * H])
        c = f * c + i * g
        h = o * jnp.tanh(c)
        return (h, c), h

    h0 = jnp.zeros((B, H), jnp.float32)
    c0 = jnp.zeros((B, H), jnp.float32)
    _, hs = jax.lax.scan(step, (h0, c0), jnp.swapaxes(x, 0, 1))
    hs = jnp.swapaxes(hs, 0, 1)                                          # (B, T, H)
    return hs @ params["w_fc"].T + params["b_fc"]


if __name__ == "__main__":
    # Small, deterministic shapes.
    B, Tc = 2, 8            # batch, caption length (=> sequence T = Tc)
    E, H, V = 32, 32, 64    # embed_size, hidden_size, vocab_size

    key = jax.random.PRNGKey(0)
    ks = jax.random.split(key, 9)
    scale = 0.1
    params = {
        "embedding": scale * jax.random.normal(ks[0], (V, E), jnp.float32),
        "w_ih":      scale * jax.random.normal(ks[1], (4 * H, E), jnp.float32),
        "w_hh":      scale * jax.random.normal(ks[2], (4 * H, H), jnp.float32),
        "b_ih":      scale * jax.random.normal(ks[3], (4 * H,), jnp.float32),
        "b_hh":      scale * jax.random.normal(ks[4], (4 * H,), jnp.float32),
        "w_fc":      scale * jax.random.normal(ks[5], (V, H), jnp.float32),
        "b_fc":      scale * jax.random.normal(ks[6], (V,), jnp.float32),
    }

    features = jax.random.normal(ks[7], (B, E), jnp.float32)
    captions = jax.random.randint(ks[8], (B, Tc), 0, V, jnp.int32)

    ref = jax.block_until_ready(_reference_forward(params, features, captions))

    # f32 matmul path: tight check against the reference.
    out = jax.block_until_ready(rnn_decoder_forward(params, features, captions))
    assert out.shape == (B, Tc, V), out.shape
    assert jnp.allclose(out, ref, atol=1e-4, rtol=1e-4), float(jnp.max(jnp.abs(out - ref)))

    # bf16 matmul inputs / gx / h (MXU-native), f32 accumulation and state: loose check.
    out_bf16 = jax.block_until_ready(
        rnn_decoder_forward(params, features, captions, matmul_dtype=jnp.bfloat16))
    assert out_bf16.shape == (B, Tc, V), out_bf16.shape
    assert jnp.allclose(out_bf16, ref, atol=5e-2, rtol=5e-2), \
        float(jnp.max(jnp.abs(out_bf16 - ref)))

    print("KERNEL_OK")
</pallas_src>

<mosaic_0001>
module attributes {stable_mosaic.version = 11 : i64} {
  func.func @_matmul_bias_kernel(%arg0: i32, %arg1: i32, %arg2: memref<64x32xf32, #tpu.memory_space<vmem>>, %arg3: memref<32x512xf32, #tpu.memory_space<vmem>>, %arg4: memref<1x512xf32, #tpu.memory_space<vmem>>, %arg5: memref<64x512xf32, #tpu.memory_space<vmem>>) attributes {dimension_semantics = [#tpu.dimension_semantics<parallel>, #tpu.dimension_semantics<parallel>], iteration_bounds = array<i64: 1, 1>, scalar_prefetch = 0 : i64, scratch_operands = 0 : i64, tpu.core_type = #tpu.core_type<tc>, window_params = [{transform_indices = @transform_0, window_bounds = array<i64: 64, 32>}, {transform_indices = @transform_1, window_bounds = array<i64: 32, 512>}, {transform_indices = @transform_2, window_bounds = array<i64: 1, 512>}, {transform_indices = @transform_3, window_bounds = array<i64: 64, 512>}]} {
    %c0 = arith.constant 0 : index
    %c0_0 = arith.constant 0 : index
    %0 = vector.load %arg2[%c0, %c0_0] : memref<64x32xf32, #tpu.memory_space<vmem>>, vector<64x32xf32>
    %c0_1 = arith.constant 0 : index
    %c0_2 = arith.constant 0 : index
    %1 = vector.load %arg3[%c0_1, %c0_2] : memref<32x512xf32, #tpu.memory_space<vmem>>, vector<32x512xf32>
    %cst = arith.constant dense<0.000000e+00> : vector<64x512xf32>
    %2 = tpu.matmul %0, %1, %cst {dimension_numbers = #tpu.dot_dimension_numbers<[1], [0], [0], [1], [0, 0, 1, 1], [], []>} : vector<64x32xf32>, vector<32x512xf32>, vector<64x512xf32> -> vector<64x512xf32>
    %c0_3 = arith.constant 0 : index
    %c0_4 = arith.constant 0 : index
    %3 = vector.load %arg4[%c0_3, %c0_4] : memref<1x512xf32, #tpu.memory_space<vmem>>, vector<1x512xf32>
    %4 = vector.broadcast %3 : vector<1x512xf32> to vector<64x512xf32>
    %5 = arith.addf %2, %4 : vector<64x512xf32>
    %c0_5 = arith.constant 0 : index
    %c0_6 = arith.constant 0 : index
    %6 = vector.load %arg5[%c0_5, %c0_6] : memref<64x512xf32, #tpu.memory_space<vmem>>, vector<64x512xf32>
    tpu.vector_store %arg5[%c0_5, %c0_6], %5 {strides = array<i32>} : memref<64x512xf32, #tpu.memory_space<vmem>>, vector<64x512xf32>,
    return
  }
  func.func @transform_0(%arg0: i32, %arg1: i32) -> (i32, i32) {
    %c0_i32 = arith.constant 0 : i32
    %c0_i32_0 = arith.constant 0 : i32
    return %arg0, %c0_i32 : i32, i32
  }
  func.func @transform_1(%arg0: i32, %arg1: i32) -> (i32, i32) {
    %c0_i32 = arith.constant 0 : i32
    %c0_i32_0 = arith.constant 0 : i32
    return %c0_i32, %arg1 : i32, i32
  }
  func.func @transform_2(%arg0: i32, %arg1: i32) -> (i32, i32) {
    %c0_i32 = arith.constant 0 : i32
    %c0_i32_0 = arith.constant 0 : i32
    return %c0_i32, %arg1 : i32, i32
  }
  func.func @transform_3(%arg0: i32, %arg1: i32) -> (i32, i32) {
    %c0_i32 = arith.constant 0 : i32
    return %arg0, %arg1 : i32, i32
  }
}

</mosaic_0001>

<llo_original>
// kernel: tpu_custom_call.1
$region0: #{tpu_custom_call.1}
  #allocation0 [shape = 'u32[]', space=smem, size = 0x4, offset = 0x4, fixed_abs, tag = 'smem constant byte address 0x4 - core index']
  #allocation1 [shape = 'u32[144,128]{1,0:T(1,128)}', space=vmem, size = 0x12000, scoped, tag = 'internal scratch']
  %s0 = inlined_call_operand.vmem [shape: f32[64,32], index: 0, kind: input, shape index: {}]
  %s1 = inlined_call_operand.hbm [shape: f32[32,512], index: 1, kind: input, shape index: {}]
  %s2 = inlined_call_operand.vmem [shape: f32[1,512], index: 2, kind: input, shape index: {}]
  %s3 = inlined_call_operand.hbm [shape: f32[64,512], index: 3, kind: output, shape index: {}]
  %s4 = sld [smem:[#allocation0]]
  $region26: #{tpu_custom_call.1} parent=0
    _
  %s6 = ssub.s32 1, %s4
  %s7 = scalar_select 0, %s6, %s4
  $region1: #{tpu_custom_call.1} parent=0
    #allocation2 [shape = 'u8[65536]{0}', space=vmem, size = 0x10000, scoped, tag = 'input window, operand 1, single buffered']
    #allocation3 [shape = 's32[1]{0}', space=sflag, size = 0x4, scoped, tag = 'scoped memory for tpu_custom_call.1']
    #allocation4 [shape = 's32[1]{0}', space=sflag, size = 0x4, scoped, tag = 'scoped memory for tpu_custom_call.1']
    #allocation5 [shape = 'u8[131072]{0}', space=vmem, size = 0x20000, scoped, tag = 'output window, operand 0, single buffered']
    %8 = vsyncpa [#allocation3], 0
    %9 = vsyncpa [#allocation4], 0
    // Predicated region
    $region2: #{tpu_custom_call.1} parent=1 // pred_check
      _
    $region3: #{tpu_custom_call.1} parent=1 // pred_check_branch
      %11 = sbr.rel (0) target = $region5
    $region4: #{tpu_custom_call.1} parent=1 // pred_region
      _
    $region5: #{tpu_custom_call.1} parent=1 // pred_fallthru
      _
    // Predicated region
    $region6: #{tpu_custom_call.1} parent=1 // pred_check
      _
    $region7: #{tpu_custom_call.1} parent=1 // pred_check_branch
      %13 = sbr.rel (0) target = $region9
    $region8: #{tpu_custom_call.1} parent=1 // pred_region
      %s15 = ssub.s32 2048, 2048
      %16 = vsyncadd [#allocation3], %s15
      %s17 = sshll.u32 [#allocation2], 4
      %s18 = int_to_ptr.vmem [resolvable:$true] %s17
      %23 = dma.hbm_to_vmem [thread:$0]  %s1, 2048, %s18, [#allocation3], 512, 512, 32
    $region9: #{tpu_custom_call.1} parent=1 // pred_fallthru
      _
    // Predicated region
    $region10: #{tpu_custom_call.1} parent=1 // pred_check
      _
    $region11: #{tpu_custom_call.1} parent=1 // pred_check_branch
      %25 = sbr.rel (0) target = $region13
    $region12: #{tpu_custom_call.1} parent=1 // pred_region
      _
    $region13: #{tpu_custom_call.1} parent=1 // pred_fallthru
      _
    // Predicated region
    $region14: #{tpu_custom_call.1} parent=1 // pred_check
      _
    $region15: #{tpu_custom_call.1} parent=1 // pred_check_branch
      %27 = sbr.rel (0) target = $region17
    $region16: #{tpu_custom_call.1} parent=1 // pred_region
      %28 = dma.done [#allocation3], 2048
    $region17: #{tpu_custom_call.1} parent=1 // pred_fallthru
      _
    %v29 = vld [vmem:[%s0] sm:$0xff]
    %v30 = vld [vmem:[%s0 + $0x8] sm:$0xff]
    %v31 = vld [vmem:[%s0 + $0x10] sm:$0xff]
    %v32 = vld [vmem:[%s0 + $0x18] sm:$0xff]
    %v33 = vld [vmem:[%s0 + $0x20] sm:$0xff]
    %v34 = vld [vmem:[%s0 + $0x28] sm:$0xff]
    %v35 = vld [vmem:[%s0 + $0x30] sm:$0xff]
    %v36 = vld [vmem:[%s0 + $0x38] sm:$0xff]
    %v37 = vld [vmem:[#allocation2] sm:$0xff]
    %v38 = vld [vmem:[#allocation2 + $0x8] sm:$0xff]
    %v39 = vld [vmem:[#allocation2 + $0x10] sm:$0xff]
    %v40 = vld [vmem:[#allocation2 + $0x18] sm:$0xff]
    %v41 = vld [vmem:[#allocation2 + $0x20] sm:$0xff]
    %v42 = vld [vmem:[#allocation2 + $0x28] sm:$0xff]
    %v43 = vld [vmem:[#allocation2 + $0x30] sm:$0xff]
    %v44 = vld [vmem:[#allocation2 + $0x38] sm:$0xff]
    %v45 = vld [vmem:[#allocation2 + $0x40] sm:$0xff]
    %v46 = vld [vmem:[#allocation2 + $0x48] sm:$0xff]
    %v47 = vld [vmem:[#allocation2 + $0x50] sm:$0xff]
    %v48 = vld [vmem:[#allocation2 + $0x58] sm:$0xff]
    %v49 = vld [vmem:[#allocation2 + $0x60] sm:$0xff]
    %v50 = vld [vmem:[#allocation2 + $0x68] sm:$0xff]
    %v51 = vld [vmem:[#allocation2 + $0x70] sm:$0xff]
    %v52 = vld [vmem:[#allocation2 + $0x78] sm:$0xff]
    %v53 = vld [vmem:[%s2] sm:$0xf]
    %v55 = vlaneseq
    %v56 = vshrl.u32 %v55, 7
    %v57 = vsub.s32 0, %v56
    %v58 = vrot.slane %v53, %v57
    %v59 = vlaneseq
    %v60 = vshrl.u32 %v59, 7
    %v61 = vsub.s32 1, %v60
    %v62 = vrot.slane %v53, %v61
    %v63 = vlaneseq
    %v64 = vshrl.u32 %v63, 7
    %v65 = vsub.s32 2, %v64
    %v66 = vrot.slane %v53, %v65
    %v67 = vlaneseq
    %v68 = vshrl.u32 %v67, 7
    %v69 = vsub.s32 3, %v68
    %v70 = vrot.slane %v53, %v69
    %vm75 = vcmask 261120
    %v77 = vsel %vm75, %v29, 0
    %v80 = vsel %vm75, %v30, 0
    %v83 = vsel %vm75, %v31, 0
    %v86 = vsel %vm75, %v32, 0
    %v89 = vsel %vm75, %v33, 0
    %v92 = vsel %vm75, %v34, 0
    %v95 = vsel %vm75, %v35, 0
    %v98 = vsel %vm75, %v36, 0
    %100 = vmatprep.subr.mxu0 %v38
    %101 = vmatpush1.msra.mxu0 %v37
    %102 = vmatprep.subr.mxu0 %v42
    %103 = vmatpush1.msra.mxu0 %v41
    %104 = vmatprep.subr.mxu0 %v46
    %105 = vmatpush1.msra.mxu0 %v45
    %106 = vmatprep.subr.mxu0 %v50
    %107 = vmatpush1.msra.mxu0 %v49
    %108 = vmatprep.subr.mxu0 0.0
    %109 = vmatpush1.msra.mxu0 0.0
    %110 = vmatprep.subr.mxu0 0.0
    %111 = vmatpush1.msra.mxu0 0.0
    %112 = vmatprep.subr.mxu0 0.0
    %113 = vmatpush1.msra.mxu0 0.0
    %114 = vmatprep.subr.mxu0 0.0
    %115 = vmatpush1.msra.mxu0 0.0
    %116 = vmatprep.subr.mxu0 0.0
    %117 = vmatpush1.msra.mxu0 0.0
    %118 = vmatprep.subr.mxu0 0.0
    %119 = vmatpush1.msra.mxu0 0.0
    %120 = vmatprep.subr.mxu0 0.0
    %121 = vmatpush1.msra.mxu0 0.0
    %122 = vmatprep.subr.mxu0 0.0
    %123 = vmatpush1.msra.mxu0 0.0
    %124 = vmatprep.subr.mxu0 0.0
    %125 = vmatpush1.msra.mxu0 0.0
    %126 = vmatprep.subr.mxu0 0.0
    %127 = vmatpush1.msra.mxu0 0.0
    %128 = vmatprep.subr.mxu0 0.0
    %129 = vmatpush1.msra.mxu0 0.0
    %130 = vmatprep.subr.mxu0 0.0
    %131 = vmatpush1.msra.mxu0 0.0
    %132 = vmatprep.subr.mxu0 0.0
    %133 = vmatpush1.msra.mxu0 0.0
    %134 = vmatprep.subr.mxu0 0.0
    %135 = vmatpush1.msra.mxu0 0.0
    %136 = vmatprep.subr.mxu0 0.0
    %137 = vmatpush1.msra.mxu0 0.0
    %138 = vmatprep.subr.mxu0 0.0
    %139 = vmatpush1.msra.mxu0 0.0
    %140 = vmatprep.subr.mxu0 0.0
    %141 = vmatpush1.msra.mxu0 0.0
    %142 = vmatprep.subr.mxu0 0.0
    %143 = vmatpush1.msra.mxu0 0.0
    %144 = vmatprep.subr.mxu0 0.0
    %145 = vmatpush1.msra.mxu0 0.0
    %146 = vmatprep.subr.mxu0 0.0
    %147 = vmatpush1.msra.mxu0 0.0
    %148 = vmatprep.subr.mxu0 0.0
    %149 = vmatpush1.msra.mxu0 0.0
    %150 = vmatprep.subr.mxu0 0.0
    %151 = vmatpush1.msra.mxu0 0.0
    %152 = vmatprep.subr.mxu0 0.0
    %153 = vmatpush1.msra.mxu0 0.0
    %154 = vmatprep.subr.mxu0 0.0
    %155 = vmatpush1.msra.mxu0 0.0
    %156 = vmatprep.subr.mxu0 0.0
    %157 = vmatpush1.msra.mxu0 0.0
    %158 = vmatprep.subr.mxu0 0.0
    %159 = vmatpush1.msra.mxu0 0.0
    %160 = vmatprep.subr.mxu0 0.0
    %161 = vmatpush1.msra.mxu0 0.0
    %162 = vmatprep.subr.mxu0 0.0
    %163 = vmatpush1.msra.mxu0 0.0
    %164 = vmatprep.mubr.f32.mxu0 0.0
    %165 = vmatmul.mubr.f32.gmra.mrb[0].mxu0 %v77
    %v166 = vpop.f32.mrb[0].mxu0
    %v167 = vadd.f32 %v58, %v166
    %v168 = vpop.f32.mrb[0].mxu0
    %v169 = vadd.f32 %v62, %v168
    %170 = vmatprep.mubr.f32.mxu0 0.0
    %171 = vmatmul.mubr.f32.gmra.mrb[0].mxu0 %v80
    %v172 = vpop.f32.mrb[0].mxu0
    %v173 = vadd.f32 %v58, %v172
    %v174 = vpop.f32.mrb[0].mxu0
    %v175 = vadd.f32 %v62, %v174
    %176 = vmatprep.mubr.f32.mxu0 0.0
    %177 = vmatmul.mubr.f32.gmra.mrb[0].mxu0 %v83
    %v178 = vpop.f32.mrb[0].mxu0
    %v179 = vadd.f32 %v58, %v178
    %v180 = vpop.f32.mrb[0].mxu0
    %v181 = vadd.f32 %v62, %v180
    %182 = vmatprep.mubr.f32.mxu0 0.0
    %183 = vmatmul.mubr.f32.gmra.mrb[0].mxu0 %v86
    %v184 = vpop.f32.mrb[0].mxu0
    %v185 = vadd.f32 %v58, %v184
    %v186 = vpop.f32.mrb[0].mxu0
    %v187 = vadd.f32 %v62, %v186
    %188 = vmatprep.mubr.f32.mxu0 0.0
    %189 = vmatmul.mubr.f32.gmra.mrb[0].mxu0 %v89
    %v190 = vpop.f32.mrb[0].mxu0
    %v191 = vadd.f32 %v58, %v190
    %v192 = vpop.f32.mrb[0].mxu0
    %v193 = vadd.f32 %v62, %v192
    %194 = vmatprep.mubr.f32.mxu0 0.0
    %195 = vmatmul.mubr.f32.gmra.mrb[0].mxu0 %v92
    %v196 = vpop.f32.mrb[0].mxu0
    %v197 = vadd.f32 %v58, %v196
    %v198 = vpop.f32.mrb[0].mxu0
    %v199 = vadd.f32 %v62, %v198
    %200 = vmatprep.mubr.f32.mxu0 0.0
    %201 = vmatmul.mubr.f32.gmra.mrb[0].mxu0 %v95
    %v202 = vpop.f32.mrb[0].mxu0
    %v203 = vadd.f32 %v58, %v202
    %v204 = vpop.f32.mrb[0].mxu0
    %v205 = vadd.f32 %v62, %v204
    %206 = vmatprep.mubr.f32.mxu0 0.0
    %207 = vmatmul.mubr.f32.gmra.mrb[0].mxu0 %v98
    %v208 = vpop.f32.mrb[0].mxu0
    %v209 = vadd.f32 %v58, %v208
    %v210 = vpop.f32.mrb[0].mxu0
    %v211 = vadd.f32 %v62, %v210
    %212 = vdwg.mxu0
    %213 = vmatprep.subr.mxu0 %v40
    %214 = vmatpush1.msra.mxu0 %v39
    %215 = vmatprep.subr.mxu0 %v44
    %216 = vmatpush1.msra.mxu0 %v43
    %217 = vmatprep.subr.mxu0 %v48
    %218 = vmatpush1.msra.mxu0 %v47
    %219 = vmatprep.subr.mxu0 %v52
    %220 = vmatpush1.msra.mxu0 %v51
    %221 = vmatprep.subr.mxu0 0.0
    %222 = vmatpush1.msra.mxu0 0.0
    %223 = vmatprep.subr.mxu0 0.0
    %224 = vmatpush1.msra.mxu0 0.0
    %225 = vmatprep.subr.mxu0 0.0
    %226 = vmatpush1.msra.mxu0 0.0
    %227 = vmatprep.subr.mxu0 0.0
    %228 = vmatpush1.msra.mxu0 0.0
    %229 = vmatprep.subr.mxu0 0.0
    %230 = vmatpush1.msra.mxu0 0.0
    %231 = vmatprep.subr.mxu0 0.0
    %232 = vmatpush1.msra.mxu0 0.0
    %233 = vmatprep.subr.mxu0 0.0
    %234 = vmatpush1.msra.mxu0 0.0
    %235 = vmatprep.subr.mxu0 0.0
    %236 = vmatpush1.msra.mxu0 0.0
    %237 = vmatprep.subr.mxu0 0.0
    %238 = vmatpush1.msra.mxu0 0.0
    %239 = vmatprep.subr.mxu0 0.0
    %240 = vmatpush1.msra.mxu0 0.0
    %241 = vmatprep.subr.mxu0 0.0
    %242 = vmatpush1.msra.mxu0 0.0
    %243 = vmatprep.subr.mxu0 0.0
    %244 = vmatpush1.msra.mxu0 0.0
    %245 = vmatprep.subr.mxu0 0.0
    %246 = vmatpush1.msra.mxu0 0.0
    %247 = vmatprep.subr.mxu0 0.0
    %248 = vmatpush1.msra.mxu0 0.0
    %249 = vmatprep.subr.mxu0 0.0
    %250 = vmatpush1.msra.mxu0 0.0
    %251 = vmatprep.subr.mxu0 0.0
    %252 = vmatpush1.msra.mxu0 0.0
    %253 = vmatprep.subr.mxu0 0.0
    %254 = vmatpush1.msra.mxu0 0.0
    %255 = vmatprep.subr.mxu0 0.0
    %256 = vmatpush1.msra.mxu0 0.0
    %257 = vmatprep.subr.mxu0 0.0
    %258 = vmatpush1.msra.mxu0 0.0
    %259 = vmatprep.subr.mxu0 0.0
    %260 = vmatpush1.msra.mxu0 0.0
    %261 = vmatprep.subr.mxu0 0.0
    %262 = vmatpush1.msra.mxu0 0.0
    %263 = vmatprep.subr.mxu0 0.0
    %264 = vmatpush1.msra.mxu0 0.0
    %265 = vmatprep.subr.mxu0 0.0
    %266 = vmatpush1.msra.mxu0 0.0
    %267 = vmatprep.subr.mxu0 0.0
    %268 = vmatpush1.msra.mxu0 0.0
    %269 = vmatprep.subr.mxu0 0.0
    %270 = vmatpush1.msra.mxu0 0.0
    %271 = vmatprep.subr.mxu0 0.0
    %272 = vmatpush1.msra.mxu0 0.0
    %273 = vmatprep.subr.mxu0 0.0
    %274 = vmatpush1.msra.mxu0 0.0
    %275 = vmatprep.subr.mxu0 0.0
    %276 = vmatpush1.msra.mxu0 0.0
    %277 = vmatprep.mubr.f32.mxu0 0.0
    %278 = vmatmul.mubr.f32.gmra.mrb[0].mxu0 %v77
    %v279 = vpop.f32.mrb[0].mxu0
    %v280 = vadd.f32 %v66, %v279
    %v281 = vpop.f32.mrb[0].mxu0
    %v282 = vadd.f32 %v70, %v281
    %283 = vmatprep.mubr.f32.mxu0 0.0
    %284 = vmatmul.mubr.f32.gmra.mrb[0].mxu0 %v80
    %v285 = vpop.f32.mrb[0].mxu0
    %v286 = vadd.f32 %v66, %v285
    %v287 = vpop.f32.mrb[0].mxu0
    %v288 = vadd.f32 %v70, %v287
    %289 = vmatprep.mubr.f32.mxu0 0.0
    %290 = vmatmul.mubr.f32.gmra.mrb[0].mxu0 %v83
    %v291 = vpop.f32.mrb[0].mxu0
    %v292 = vadd.f32 %v66, %v291
    %v293 = vpop.f32.mrb[0].mxu0
    %v294 = vadd.f32 %v70, %v293
    %295 = vmatprep.mubr.f32.mxu0 0.0
    %296 = vmatmul.mubr.f32.gmra.mrb[0].mxu0 %v86
    %v297 = vpop.f32.mrb[0].mxu0
    %v298 = vadd.f32 %v66, %v297
    %v299 = vpop.f32.mrb[0].mxu0
    %v300 = vadd.f32 %v70, %v299
    %301 = vmatprep.mubr.f32.mxu0 0.0
    %302 = vmatmul.mubr.f32.gmra.mrb[0].mxu0 %v89
    %v303 = vpop.f32.mrb[0].mxu0
    %v304 = vadd.f32 %v66, %v303
    %v305 = vpop.f32.mrb[0].mxu0
    %v306 = vadd.f32 %v70, %v305
    %307 = vmatprep.mubr.f32.mxu0 0.0
    %308 = vmatmul.mubr.f32.gmra.mrb[0].mxu0 %v92
    %v309 = vpop.f32.mrb[0].mxu0
    %v310 = vadd.f32 %v66, %v309
    %v311 = vpop.f32.mrb[0].mxu0
    %v312 = vadd.f32 %v70, %v311
    %313 = vmatprep.mubr.f32.mxu0 0.0
    %314 = vmatmul.mubr.f32.gmra.mrb[0].mxu0 %v95
    %v315 = vpop.f32.mrb[0].mxu0
    %v316 = vadd.f32 %v66, %v315
    %v317 = vpop.f32.mrb[0].mxu0
    %v318 = vadd.f32 %v70, %v317
    %319 = vmatprep.mubr.f32.mxu0 0.0
    %320 = vmatmul.mubr.f32.gmra.mrb[0].mxu0 %v98
    %v321 = vpop.f32.mrb[0].mxu0
    %v322 = vadd.f32 %v66, %v321
    %v323 = vpop.f32.mrb[0].mxu0
    %v324 = vadd.f32 %v70, %v323
    %325 = vdwg.mxu0
    %326 = vst [vmem:[#allocation5] sm:$0xff] %v167
    %327 = vst [vmem:[#allocation5 + $0x8] sm:$0xff] %v169
    %328 = vst [vmem:[#allocation5 + $0x10] sm:$0xff] %v280
    %329 = vst [vmem:[#allocation5 + $0x18] sm:$0xff] %v282
    %330 = vst [vmem:[#allocation5 + $0x20] sm:$0xff] %v173
    %331 = vst [vmem:[#allocation5 + $0x28] sm:$0xff] %v175
    %332 = vst [vmem:[#allocation5 + $0x30] sm:$0xff] %v286
    %333 = vst [vmem:[#allocation5 + $0x38] sm:$0xff] %v288
    %334 = vst [vmem:[#allocation5 + $0x40] sm:$0xff] %v179
    %335 = vst [vmem:[#allocation5 + $0x48] sm:$0xff] %v181
    %336 = vst [vmem:[#allocation5 + $0x50] sm:$0xff] %v292
    %337 = vst [vmem:[#allocation5 + $0x58] sm:$0xff] %v294
    %338 = vst [vmem:[#allocation5 + $0x60] sm:$0xff] %v185
    %339 = vst [vmem:[#allocation5 + $0x68] sm:$0xff] %v187
    %340 = vst [vmem:[#allocation5 + $0x70] sm:$0xff] %v298
    %341 = vst [vmem:[#allocation5 + $0x78] sm:$0xff] %v300
    %342 = vst [vmem:[#allocation5 + $0x80] sm:$0xff] %v191
    %343 = vst [vmem:[#allocation5 + $0x88] sm:$0xff] %v193
    %344 = vst [vmem:[#allocation5 + $0x90] sm:$0xff] %v304
    %345 = vst [vmem:[#allocation5 + $0x98] sm:$0xff] %v306
    %346 = vst [vmem:[#allocation5 + $0xa0] sm:$0xff] %v197
    %347 = vst [vmem:[#allocation5 + $0xa8] sm:$0xff] %v199
    %348 = vst [vmem:[#allocation5 + $0xb0] sm:$0xff] %v310
    %349 = vst [vmem:[#allocation5 + $0xb8] sm:$0xff] %v312
    %350 = vst [vmem:[#allocation5 + $0xc0] sm:$0xff] %v203
    %351 = vst [vmem:[#allocation5 + $0xc8] sm:$0xff] %v205
    %352 = vst [vmem:[#allocation5 + $0xd0] sm:$0xff] %v316
    %353 = vst [vmem:[#allocation5 + $0xd8] sm:$0xff] %v318
    %354 = vst [vmem:[#allocation5 + $0xe0] sm:$0xff] %v209
    %355 = vst [vmem:[#allocation5 + $0xe8] sm:$0xff] %v211
    %356 = vst [vmem:[#allocation5 + $0xf0] sm:$0xff] %v322
    %357 = vst [vmem:[#allocation5 + $0xf8] sm:$0xff] %v324
    // Predicated region
    $region18: #{tpu_custom_call.1} parent=1 // pred_check
      _
    $region19: #{tpu_custom_call.1} parent=1 // pred_check_branch
      %359 = sbr.rel (0) target = $region21
    $region20: #{tpu_custom_call.1} parent=1 // pred_region
      %s361 = ssub.s32 4096, 4096
      %362 = vsyncadd [#allocation4], %s361
      %s363 = sshll.u32 [#allocation5], 4
      %s364 = int_to_ptr.vmem [resolvable:$true] %s363
      %369 = dma.vmem_to_hbm [thread:$0]  %s364, 4096, %s3, [#allocation4], 512, 512, 32
    $region21: #{tpu_custom_call.1} parent=1 // pred_fallthru
      _
    // Predicated region
    $region22: #{tpu_custom_call.1} parent=1 // pred_check
      _
    $region23: #{tpu_custom_call.1} parent=1 // pred_check_branch
      %371 = sbr.rel (0) target = $region25
    $region24: #{tpu_custom_call.1} parent=1 // pred_region
      %372 = dma.done [#allocation4], 4096
    $region25: #{tpu_custom_call.1} parent=1 // pred_fallthru
      _
    %373 = vsyncpa [#allocation3], 1
    %374 = vsyncpa [#allocation4], 1

</llo_original>
